<compile_context>
chip_gen: v5e
topology: v5e:2x2
jax: 0.10.0
libtpu: 0.0.40
codegen_flags: <defaults>
</compile_context>

<pallas_src>
import functools
import math

import jax
import jax.numpy as jnp
from jax.experimental import pallas as pl
from jax.experimental.pallas import tpu as pltpu


# ----------------------------- Pallas kernel -------------------------------


def _fused_gcn_kernel(*refs, n_layers, out_valid, compute_dtype):
    """Fused GCN forward.

    refs = (x_ref, adj_ref, w0_ref, b0_ref, ..., w{L-1}_ref, b{L-1}_ref, o_ref)

    Per layer:   out = adj @ (h @ W + b)      (W already transposed on host)
                 h   = relu(out)              (all but last layer)
    Last layer:  o   = log_softmax(out[:, :out_valid])  (padded cols masked)
    """
    x_ref, adj_ref = refs[0], refs[1]
    o_ref = refs[-1]
    wb_refs = refs[2:-1]

    adj = adj_ref[...]                      # (Np, Np)   compute_dtype
    h = x_ref[...]                          # (Np, F0p)  compute_dtype

    for li in range(n_layers):
        w = wb_refs[2 * li][...]            # (Fin_p, Fout_p) compute_dtype
        b = wb_refs[2 * li + 1][...]        # (1, Fout_p)     f32

        # support = h @ W + b   (nn.Linear semantics, W pre-transposed)
        support = jnp.dot(h, w, preferred_element_type=jnp.float32) + b
        # out = adj @ support   (dense stand-in for torch.sparse.mm)
        out = jnp.dot(adj, support.astype(compute_dtype),
                      preferred_element_type=jnp.float32)

        if li < n_layers - 1:
            # ReLU in f32, re-pack to compute dtype for the next MXU pass.
            # (dropout: identity in eval mode)
            h = jnp.maximum(out, 0.0).astype(compute_dtype)
        else:
            # log_softmax over dim=1, restricted to the real (unpadded) cols.
            col = jax.lax.broadcasted_iota(jnp.int32, out.shape, 1)
            logits = jnp.where(col < out_valid, out, -jnp.inf)
            m = jnp.max(logits, axis=1, keepdims=True)
            shifted = logits - m
            lse = jnp.log(jnp.sum(jnp.exp(shifted), axis=1, keepdims=True))
            o_ref[...] = (shifted - lse).astype(o_ref.dtype)


# ------------------------------ JAX wrappers --------------------------------


_LANE = 128   # lane width (last dim)
_SUB = 16     # sublane multiple (covers bf16 (16,128) packing)


def _round_up(v, m):
    return (v + m - 1) // m * m


def _pad2d(a, rows, cols):
    return jnp.pad(a, ((0, rows - a.shape[0]), (0, cols - a.shape[1])))


def gcn_forward(x, adj, params, *, compute_dtype=jnp.bfloat16):
    """Full GCN forward as one fused pallas_call.

    params: list of (w, b) with PyTorch layout w=(out_dims, in_dims),
            b=(1, out_dims).
    """
    n, f = x.shape
    n_layers = len(params)
    out_dims = params[-1][0].shape[0]

    # Padded sizes: lane-dense feature dims, sublane-aligned node count.
    n_p = _round_up(n, _SUB)
    dims = [f] + [w.shape[0] for w, _ in params]
    dims_p = [_round_up(d, _LANE) for d in dims]

    x_p = _pad2d(x, n_p, dims_p[0]).astype(compute_dtype)
    adj_p = _pad2d(adj, n_p, n_p).astype(compute_dtype)

    # Pre-transpose weights to (in, out), zero-pad, cast; biases stay f32.
    flat_wb = []
    for li, (w, b) in enumerate(params):
        w_t = _pad2d(w.T, dims_p[li], dims_p[li + 1]).astype(compute_dtype)
        b_p = _pad2d(b, 1, dims_p[li + 1]).astype(jnp.float32)
        flat_wb += [w_t, b_p]

    operands = [x_p, adj_p] + flat_wb

    kernel = functools.partial(
        _fused_gcn_kernel,
        n_layers=n_layers,
        out_valid=out_dims,
        compute_dtype=compute_dtype,
    )

    out_p = pl.pallas_call(
        kernel,
        out_shape=jax.ShapeDtypeStruct((n_p, dims_p[-1]), jnp.float32),
        grid=(1,),
        in_specs=[pl.BlockSpec(op.shape, lambda i: (0, 0)) for op in operands],
        out_specs=pl.BlockSpec((n_p, dims_p[-1]), lambda i: (0, 0)),
        compiler_params=pltpu.CompilerParams(
            dimension_semantics=("arbitrary",)),
    )(*operands)

    # Strip node-row and feature-column padding.
    return out_p[:n, :out_dims]


def init_gcn_params(key, num_layers, in_dims, hidden_dims, out_dims):
    """Deterministic nn.Linear-style init: U(-1/sqrt(fan_in), 1/sqrt(fan_in))."""
    layer_sizes = [in_dims] + [hidden_dims] * num_layers + [out_dims]
    params = []
    for idim, odim in zip(layer_sizes[:-1], layer_sizes[1:]):
        key, kw, kb = jax.random.split(key, 3)
        bound = 1.0 / math.sqrt(idim)
        w = jax.random.uniform(kw, (odim, idim), jnp.float32, -bound, bound)
        b = jax.random.uniform(kb, (1, odim), jnp.float32, -bound, bound)
        params.append((w, b))
    return params


# ------------------------------- reference ----------------------------------


def gcn_forward_ref(x, adj, params, *, compute_dtype=jnp.bfloat16):
    """Pure-JAX reference mirroring the kernel's mixed-precision policy
    (bf16 matmul inputs, f32 accumulation and epilogue)."""
    h = x.astype(compute_dtype)
    a = adj.astype(compute_dtype)
    n_layers = len(params)
    for li, (w, b) in enumerate(params):
        w_t = w.T.astype(compute_dtype)
        support = jnp.dot(h, w_t, preferred_element_type=jnp.float32) + b
        out = jnp.dot(a, support.astype(compute_dtype),
                      preferred_element_type=jnp.float32)
        if li < n_layers - 1:
            h = jnp.maximum(out, 0.0).astype(compute_dtype)
        else:
            return jax.nn.log_softmax(out, axis=1)


# --------------------------------- main --------------------------------------


if __name__ == "__main__":
    key = jax.random.PRNGKey(0)

    num_layers = 2
    num_nodes = 8
    in_dims = 16
    hidden_dims = 32
    out_dims = 8

    k_x, k_adj, k_p = jax.random.split(key, 3)

    x = jax.random.normal(k_x, (num_nodes, in_dims), jnp.float32)

    # Simple symmetric, row-normalized dense adjacency (stand-in for a sparse
    # normalized graph Laplacian-style adjacency).
    a = jax.random.uniform(k_adj, (num_nodes, num_nodes), jnp.float32)
    a = (a + a.T) * 0.5 + jnp.eye(num_nodes, dtype=jnp.float32)
    adj = a / jnp.sum(a, axis=1, keepdims=True)

    params = init_gcn_params(k_p, num_layers, in_dims, hidden_dims, out_dims)

    out = gcn_forward(x, adj, params)
    out = jax.block_until_ready(out)

    ref = gcn_forward_ref(x, adj, params)
    assert out.shape == (num_nodes, out_dims)
    max_err = jnp.max(jnp.abs(out - ref))
    assert jnp.allclose(out, ref, atol=1e-3, rtol=1e-3), (
        f"max abs diff {max_err}")

    print("KERNEL_OK")
</pallas_src>

<mosaic_0001>
module attributes {stable_mosaic.version = 11 : i64} {
  func.func @_fused_gcn_kernel(%arg0: i32, %arg1: memref<16x128xbf16, #tpu.memory_space<vmem>>, %arg2: memref<16x16xbf16, #tpu.memory_space<vmem>>, %arg3: memref<128x128xbf16, #tpu.memory_space<vmem>>, %arg4: memref<1x128xf32, #tpu.memory_space<vmem>>, %arg5: memref<128x128xbf16, #tpu.memory_space<vmem>>, %arg6: memref<1x128xf32, #tpu.memory_space<vmem>>, %arg7: memref<128x128xbf16, #tpu.memory_space<vmem>>, %arg8: memref<1x128xf32, #tpu.memory_space<vmem>>, %arg9: memref<16x128xf32, #tpu.memory_space<vmem>>) attributes {dimension_semantics = [#tpu.dimension_semantics<arbitrary>], iteration_bounds = array<i64: 1>, scalar_prefetch = 0 : i64, scratch_operands = 0 : i64, tpu.core_type = #tpu.core_type<tc>, window_params = [{pipeline_mode = #tpu.pipeline_mode<synchronous>, transform_indices = @transform_0, window_bounds = array<i64: 16, 128>}, {pipeline_mode = #tpu.pipeline_mode<synchronous>, transform_indices = @transform_1, window_bounds = array<i64: 16, 16>}, {pipeline_mode = #tpu.pipeline_mode<synchronous>, transform_indices = @transform_2, window_bounds = array<i64: 128, 128>}, {pipeline_mode = #tpu.pipeline_mode<synchronous>, transform_indices = @transform_3, window_bounds = array<i64: 1, 128>}, {pipeline_mode = #tpu.pipeline_mode<synchronous>, transform_indices = @transform_4, window_bounds = array<i64: 128, 128>}, {pipeline_mode = #tpu.pipeline_mode<synchronous>, transform_indices = @transform_5, window_bounds = array<i64: 1, 128>}, {pipeline_mode = #tpu.pipeline_mode<synchronous>, transform_indices = @transform_6, window_bounds = array<i64: 128, 128>}, {pipeline_mode = #tpu.pipeline_mode<synchronous>, transform_indices = @transform_7, window_bounds = array<i64: 1, 128>}, {pipeline_mode = #tpu.pipeline_mode<synchronous>, transform_indices = @transform_8, window_bounds = array<i64: 16, 128>}]} {
    %c0 = arith.constant 0 : index
    %c0_0 = arith.constant 0 : index
    %0 = vector.load %arg2[%c0, %c0_0] : memref<16x16xbf16, #tpu.memory_space<vmem>>, vector<16x16xbf16>
    %c0_1 = arith.constant 0 : index
    %c0_2 = arith.constant 0 : index
    %1 = vector.load %arg1[%c0_1, %c0_2] : memref<16x128xbf16, #tpu.memory_space<vmem>>, vector<16x128xbf16>
    %c0_3 = arith.constant 0 : index
    %c0_4 = arith.constant 0 : index
    %2 = vector.load %arg3[%c0_3, %c0_4] : memref<128x128xbf16, #tpu.memory_space<vmem>>, vector<128x128xbf16>
    %c0_5 = arith.constant 0 : index
    %c0_6 = arith.constant 0 : index
    %3 = vector.load %arg4[%c0_5, %c0_6] : memref<1x128xf32, #tpu.memory_space<vmem>>, vector<1x128xf32>
    %cst = arith.constant dense<0.000000e+00> : vector<16x128xf32>
    %4 = tpu.matmul %1, %2, %cst {dimension_numbers = #tpu.dot_dimension_numbers<[1], [0], [0], [1], [0, 0, 1, 1], [], []>} : vector<16x128xbf16>, vector<128x128xbf16>, vector<16x128xf32> -> vector<16x128xf32>
    %5 = vector.broadcast %3 : vector<1x128xf32> to vector<16x128xf32>
    %6 = arith.addf %4, %5 : vector<16x128xf32>
    %7 = arith.truncf %6 : vector<16x128xf32> to vector<16x128xbf16>
    %cst_7 = arith.constant dense<0.000000e+00> : vector<16x128xf32>
    %8 = tpu.matmul %0, %7, %cst_7 {dimension_numbers = #tpu.dot_dimension_numbers<[1], [0], [0], [1], [0, 0, 1, 1], [], []>} : vector<16x16xbf16>, vector<16x128xbf16>, vector<16x128xf32> -> vector<16x128xf32>
    %cst_8 = arith.constant 0.000000e+00 : f32
    %9 = vector.broadcast %cst_8 : f32 to vector<16x128xf32>
    %10 = arith.maximumf %8, %9 : vector<16x128xf32>
    %11 = arith.truncf %10 : vector<16x128xf32> to vector<16x128xbf16>
    %c0_9 = arith.constant 0 : index
    %c0_10 = arith.constant 0 : index
    %12 = vector.load %arg5[%c0_9, %c0_10] : memref<128x128xbf16, #tpu.memory_space<vmem>>, vector<128x128xbf16>
    %c0_11 = arith.constant 0 : index
    %c0_12 = arith.constant 0 : index
    %13 = vector.load %arg6[%c0_11, %c0_12] : memref<1x128xf32, #tpu.memory_space<vmem>>, vector<1x128xf32>
    %cst_13 = arith.constant dense<0.000000e+00> : vector<16x128xf32>
    %14 = tpu.matmul %11, %12, %cst_13 {dimension_numbers = #tpu.dot_dimension_numbers<[1], [0], [0], [1], [0, 0, 1, 1], [], []>} : vector<16x128xbf16>, vector<128x128xbf16>, vector<16x128xf32> -> vector<16x128xf32>
    %15 = vector.broadcast %13 : vector<1x128xf32> to vector<16x128xf32>
    %16 = arith.addf %14, %15 : vector<16x128xf32>
    %17 = arith.truncf %16 : vector<16x128xf32> to vector<16x128xbf16>
    %cst_14 = arith.constant dense<0.000000e+00> : vector<16x128xf32>
    %18 = tpu.matmul %0, %17, %cst_14 {dimension_numbers = #tpu.dot_dimension_numbers<[1], [0], [0], [1], [0, 0, 1, 1], [], []>} : vector<16x16xbf16>, vector<16x128xbf16>, vector<16x128xf32> -> vector<16x128xf32>
    %cst_15 = arith.constant 0.000000e+00 : f32
    %19 = vector.broadcast %cst_15 : f32 to vector<16x128xf32>
    %20 = arith.maximumf %18, %19 : vector<16x128xf32>
    %21 = arith.truncf %20 : vector<16x128xf32> to vector<16x128xbf16>
    %c0_16 = arith.constant 0 : index
    %c0_17 = arith.constant 0 : index
    %22 = vector.load %arg7[%c0_16, %c0_17] : memref<128x128xbf16, #tpu.memory_space<vmem>>, vector<128x128xbf16>
    %c0_18 = arith.constant 0 : index
    %c0_19 = arith.constant 0 : index
    %23 = vector.load %arg8[%c0_18, %c0_19] : memref<1x128xf32, #tpu.memory_space<vmem>>, vector<1x128xf32>
    %cst_20 = arith.constant dense<0.000000e+00> : vector<16x128xf32>
    %24 = tpu.matmul %21, %22, %cst_20 {dimension_numbers = #tpu.dot_dimension_numbers<[1], [0], [0], [1], [0, 0, 1, 1], [], []>} : vector<16x128xbf16>, vector<128x128xbf16>, vector<16x128xf32> -> vector<16x128xf32>
    %25 = vector.broadcast %23 : vector<1x128xf32> to vector<16x128xf32>
    %26 = arith.addf %24, %25 : vector<16x128xf32>
    %27 = arith.truncf %26 : vector<16x128xf32> to vector<16x128xbf16>
    %cst_21 = arith.constant dense<0.000000e+00> : vector<16x128xf32>
    %28 = tpu.matmul %0, %27, %cst_21 {dimension_numbers = #tpu.dot_dimension_numbers<[1], [0], [0], [1], [0, 0, 1, 1], [], []>} : vector<16x16xbf16>, vector<16x128xbf16>, vector<16x128xf32> -> vector<16x128xf32>
    %29 = tpu.iota {dimensions = array<i32: 1>} : vector<16x128xi32>
    %c8_i32 = arith.constant 8 : i32
    %30 = vector.broadcast %c8_i32 : i32 to vector<16x128xi32>
    %31 = arith.cmpi slt, %29, %30 : vector<16x128xi32>
    %cst_22 = arith.constant 0xFF800000 : f32
    %32 = vector.broadcast %cst_22 : f32 to vector<16x128xf32>
    %33 = arith.select %31, %28, %32 : vector<16x128xi1>, vector<16x128xf32>
    %cst_23 = arith.constant dense<0xFF800000> : vector<16xf32>
    %34 = vector.multi_reduction <maximumf>, %33, %cst_23 [1] : vector<16x128xf32> to vector<16xf32>
    %35 = vector.shape_cast %34 : vector<16xf32> to vector<16x1xf32>
    %36 = vector.broadcast %35 : vector<16x1xf32> to vector<16x128xf32>
    %37 = arith.subf %33, %36 : vector<16x128xf32>
    %38 = math.exp %37 : vector<16x128xf32>
    %cst_24 = arith.constant dense<0.000000e+00> : vector<16xf32>
    %39 = vector.multi_reduction <add>, %38, %cst_24 [1] : vector<16x128xf32> to vector<16xf32>
    %40 = vector.shape_cast %39 : vector<16xf32> to vector<16x1xf32>
    %41 = math.log %40 : vector<16x1xf32>
    %42 = vector.broadcast %41 : vector<16x1xf32> to vector<16x128xf32>
    %43 = arith.subf %37, %42 : vector<16x128xf32>
    %c0_25 = arith.constant 0 : index
    %c0_26 = arith.constant 0 : index
    %44 = vector.load %arg9[%c0_25, %c0_26] : memref<16x128xf32, #tpu.memory_space<vmem>>, vector<16x128xf32>
    tpu.vector_store %arg9[%c0_25, %c0_26], %43 {strides = array<i32>} : memref<16x128xf32, #tpu.memory_space<vmem>>, vector<16x128xf32>,
    return
  }
  func.func @transform_0(%arg0: i32) -> (i32, i32) {
    %c0_i32 = arith.constant 0 : i32
    %c0_i32_0 = arith.constant 0 : i32
    %c0_i32_1 = arith.constant 0 : i32
    return %c0_i32, %c0_i32_0 : i32, i32
  }
  func.func @transform_1(%arg0: i32) -> (i32, i32) {
    %c0_i32 = arith.constant 0 : i32
    %c0_i32_0 = arith.constant 0 : i32
    %c0_i32_1 = arith.constant 0 : i32
    return %c0_i32, %c0_i32_0 : i32, i32
  }
  func.func @transform_2(%arg0: i32) -> (i32, i32) {
    %c0_i32 = arith.constant 0 : i32
    %c0_i32_0 = arith.constant 0 : i32
    %c0_i32_1 = arith.constant 0 : i32
    return %c0_i32, %c0_i32_0 : i32, i32
  }
  func.func @transform_3(%arg0: i32) -> (i32, i32) {
    %c0_i32 = arith.constant 0 : i32
    %c0_i32_0 = arith.constant 0 : i32
    %c0_i32_1 = arith.constant 0 : i32
    return %c0_i32, %c0_i32_0 : i32, i32
  }
  func.func @transform_4(%arg0: i32) -> (i32, i32) {
    %c0_i32 = arith.constant 0 : i32
    %c0_i32_0 = arith.constant 0 : i32
    %c0_i32_1 = arith.constant 0 : i32
    return %c0_i32, %c0_i32_0 : i32, i32
  }
  func.func @transform_5(%arg0: i32) -> (i32, i32) {
    %c0_i32 = arith.constant 0 : i32
    %c0_i32_0 = arith.constant 0 : i32
    %c0_i32_1 = arith.constant 0 : i32
    return %c0_i32, %c0_i32_0 : i32, i32
  }
  func.func @transform_6(%arg0: i32) -> (i32, i32) {
    %c0_i32 = arith.constant 0 : i32
    %c0_i32_0 = arith.constant 0 : i32
    %c0_i32_1 = arith.constant 0 : i32
    return %c0_i32, %c0_i32_0 : i32, i32
  }
  func.func @transform_7(%arg0: i32) -> (i32, i32) {
    %c0_i32 = arith.constant 0 : i32
    %c0_i32_0 = arith.constant 0 : i32
    %c0_i32_1 = arith.constant 0 : i32
    return %c0_i32, %c0_i32_0 : i32, i32
  }
  func.func @transform_8(%arg0: i32) -> (i32, i32) {
    %c0_i32 = arith.constant 0 : i32
    %c0_i32_0 = arith.constant 0 : i32
    %c0_i32_1 = arith.constant 0 : i32
    return %c0_i32, %c0_i32_0 : i32, i32
  }
}

</mosaic_0001>

<llo_original>
// kernel: tpu_custom_call.1
$region0: #{tpu_custom_call.1}
  #allocation0 [shape = 'u32[]', space=smem, size = 0x4, offset = 0x4, fixed_abs, tag = 'smem constant byte address 0x4 - core index']
  #allocation1 [shape = 'u32[72,128]{1,0:T(1,128)}', space=vmem, size = 0x9000, scoped, tag = 'internal scratch']
  %s0 = inlined_call_operand.hbm [shape: bf16[16,128], index: 0, kind: input, shape index: {}]
  %s1 = inlined_call_operand.hbm [shape: bf16[16,16], index: 1, kind: input, shape index: {}]
  %s2 = inlined_call_operand.hbm [shape: bf16[128,128], index: 2, kind: input, shape index: {}]
  %s3 = inlined_call_operand.vmem [shape: f32[1,128], index: 3, kind: input, shape index: {}]
  %s4 = inlined_call_operand.hbm [shape: bf16[128,128], index: 4, kind: input, shape index: {}]
  %s5 = inlined_call_operand.vmem [shape: f32[1,128], index: 5, kind: input, shape index: {}]
  %s6 = inlined_call_operand.hbm [shape: bf16[128,128], index: 6, kind: input, shape index: {}]
  %s7 = inlined_call_operand.vmem [shape: f32[1,128], index: 7, kind: input, shape index: {}]
  %s8 = inlined_call_operand.hbm [shape: f32[16,128], index: 8, kind: output, shape index: {}]
  %s9 = sld [smem:[#allocation0]]
  $region62: #{tpu_custom_call.1} parent=0
    _
  %s11 = ssub.s32 1, %s9
  %s12 = scalar_select 0, %s11, %s9
  $region1: #{tpu_custom_call.1} parent=0
    #allocation2 [shape = 'u8[4096]{0}', space=vmem, size = 0x1000, scoped, tag = 'input window, operand 0, single buffered']
    #allocation3 [shape = 's32[1]{0}', space=sflag, size = 0x4, scoped, tag = 'scoped memory for tpu_custom_call.1']
    #allocation4 [shape = 's32[1]{0}', space=sflag, size = 0x4, scoped, tag = 'scoped memory for tpu_custom_call.1']
    #allocation5 [shape = 'u8[4096]{0}', space=vmem, size = 0x1000, scoped, tag = 'input window, operand 1, single buffered']
    #allocation6 [shape = 's32[1]{0}', space=sflag, size = 0x4, scoped, tag = 'scoped memory for tpu_custom_call.1']
    #allocation7 [shape = 'u8[32768]{0}', space=vmem, size = 0x8000, scoped, tag = 'input window, operand 2, single buffered']
    #allocation8 [shape = 'u8[32768]{0}', space=vmem, size = 0x8000, scoped, tag = 'input window, operand 4, single buffered']
    #allocation9 [shape = 's32[1]{0}', space=sflag, size = 0x4, scoped, tag = 'scoped memory for tpu_custom_call.1']
    #allocation10 [shape = 'u8[32768]{0}', space=vmem, size = 0x8000, scoped, tag = 'input window, operand 6, single buffered']
    #allocation11 [shape = 'u8[8192]{0}', space=vmem, size = 0x2000, scoped, tag = 'output window, operand 0, single buffered']
    %13 = vsyncpa [#allocation3], 0
    %14 = vsyncpa [#allocation6], 0
    %15 = vsyncpa [#allocation9], 0
    %16 = vsyncpa [#allocation4], 0
    // Predicated region
    $region2: #{tpu_custom_call.1} parent=1 // pred_check
      _
    $region3: #{tpu_custom_call.1} parent=1 // pred_check_branch
      %18 = sbr.rel (0) target = $region5
    $region4: #{tpu_custom_call.1} parent=1 // pred_region
      %20 = vsyncadd [#allocation3], 0
      %s21 = sshll.u32 %s0, 4
      %s22 = int_to_ptr.hbm [resolvable:$true] %s21
      %s23 = sshll.u32 [#allocation2], 4
      %s24 = int_to_ptr.vmem [resolvable:$true] %s23
      %29 = dma.hbm_to_vmem [thread:$0]  %s22, 128, %s24, [#allocation3], 64, 64, 4
    $region5: #{tpu_custom_call.1} parent=1 // pred_fallthru
      _
    // Predicated region
    $region6: #{tpu_custom_call.1} parent=1 // pred_check
      _
    $region7: #{tpu_custom_call.1} parent=1 // pred_check_branch
      %31 = sbr.rel (0) target = $region9
    $region8: #{tpu_custom_call.1} parent=1 // pred_region
      %33 = vsyncadd [#allocation6], 0
      %s34 = sshll.u32 %s1, 4
      %s35 = int_to_ptr.hbm [resolvable:$true] %s34
      %s36 = sshll.u32 [#allocation5], 4
      %s37 = int_to_ptr.vmem [resolvable:$true] %s36
      %42 = dma.hbm_to_vmem [thread:$0]  %s35, 128, %s37, [#allocation6], 64, 64, 4
    $region9: #{tpu_custom_call.1} parent=1 // pred_fallthru
      _
    // Predicated region
    $region10: #{tpu_custom_call.1} parent=1 // pred_check
      _
    $region11: #{tpu_custom_call.1} parent=1 // pred_check_branch
      %44 = sbr.rel (0) target = $region13
    $region12: #{tpu_custom_call.1} parent=1 // pred_region
      %46 = vsyncadd [#allocation6], 0
      %s47 = sshll.u32 %s2, 4
      %s48 = int_to_ptr.hbm [resolvable:$true] %s47
      %s49 = sshll.u32 [#allocation7], 4
      %s50 = int_to_ptr.vmem [resolvable:$true] %s49
      %55 = dma.hbm_to_vmem [thread:$0]  %s48, 1024, %s50, [#allocation6], 64, 64, 4
    $region13: #{tpu_custom_call.1} parent=1 // pred_fallthru
      _
    // Predicated region
    $region14: #{tpu_custom_call.1} parent=1 // pred_check
      _
    $region15: #{tpu_custom_call.1} parent=1 // pred_check_branch
      %57 = sbr.rel (0) target = $region17
    $region16: #{tpu_custom_call.1} parent=1 // pred_region
      _
    $region17: #{tpu_custom_call.1} parent=1 // pred_fallthru
      _
    // Predicated region
    $region18: #{tpu_custom_call.1} parent=1 // pred_check
      _
    $region19: #{tpu_custom_call.1} parent=1 // pred_check_branch
      %59 = sbr.rel (0) target = $region21
    $region20: #{tpu_custom_call.1} parent=1 // pred_region
      %61 = vsyncadd [#allocation9], 0
      %s62 = sshll.u32 %s4, 4
      %s63 = int_to_ptr.hbm [resolvable:$true] %s62
      %s64 = sshll.u32 [#allocation8], 4
      %s65 = int_to_ptr.vmem [resolvable:$true] %s64
      %70 = dma.hbm_to_vmem [thread:$0]  %s63, 1024, %s65, [#allocation9], 64, 64, 4
    $region21: #{tpu_custom_call.1} parent=1 // pred_fallthru
      _
    // Predicated region
    $region22: #{tpu_custom_call.1} parent=1 // pred_check
      _
    $region23: #{tpu_custom_call.1} parent=1 // pred_check_branch
      %72 = sbr.rel (0) target = $region25
    $region24: #{tpu_custom_call.1} parent=1 // pred_region
      _
    $region25: #{tpu_custom_call.1} parent=1 // pred_fallthru
      _
    // Predicated region
    $region26: #{tpu_custom_call.1} parent=1 // pred_check
      _
    $region27: #{tpu_custom_call.1} parent=1 // pred_check_branch
      %74 = sbr.rel (0) target = $region29
    $region28: #{tpu_custom_call.1} parent=1 // pred_region
      %76 = vsyncadd [#allocation9], 0
      %s77 = sshll.u32 %s6, 4
      %s78 = int_to_ptr.hbm [resolvable:$true] %s77
      %s79 = sshll.u32 [#allocation10], 4
      %s80 = int_to_ptr.vmem [resolvable:$true] %s79
      %85 = dma.hbm_to_vmem [thread:$0]  %s78, 1024, %s80, [#allocation9], 64, 64, 4
    $region29: #{tpu_custom_call.1} parent=1 // pred_fallthru
      _
    // Predicated region
    $region30: #{tpu_custom_call.1} parent=1 // pred_check
      _
    $region31: #{tpu_custom_call.1} parent=1 // pred_check_branch
      %87 = sbr.rel (0) target = $region33
    $region32: #{tpu_custom_call.1} parent=1 // pred_region
      _
    $region33: #{tpu_custom_call.1} parent=1 // pred_fallthru
      _
    // Predicated region
    $region34: #{tpu_custom_call.1} parent=1 // pred_check
      _
    $region35: #{tpu_custom_call.1} parent=1 // pred_check_branch
      %89 = sbr.rel (0) target = $region37
    $region36: #{tpu_custom_call.1} parent=1 // pred_region
      %91 = dma.done [#allocation3], 128
    $region37: #{tpu_custom_call.1} parent=1 // pred_fallthru
      _
    // Predicated region
    $region38: #{tpu_custom_call.1} parent=1 // pred_check
      _
    $region39: #{tpu_custom_call.1} parent=1 // pred_check_branch
      %93 = sbr.rel (0) target = $region41
    $region40: #{tpu_custom_call.1} parent=1 // pred_region
      %95 = dma.done [#allocation6], 128
    $region41: #{tpu_custom_call.1} parent=1 // pred_fallthru
      _
    // Predicated region
    $region42: #{tpu_custom_call.1} parent=1 // pred_check
      _
    $region43: #{tpu_custom_call.1} parent=1 // pred_check_branch
      %97 = sbr.rel (0) target = $region45
    $region44: #{tpu_custom_call.1} parent=1 // pred_region
      %99 = dma.done [#allocation6], 1024
    $region45: #{tpu_custom_call.1} parent=1 // pred_fallthru
      _
    // Predicated region
    $region46: #{tpu_custom_call.1} parent=1 // pred_check
      _
    $region47: #{tpu_custom_call.1} parent=1 // pred_check_branch
      %101 = sbr.rel (0) target = $region49
    $region48: #{tpu_custom_call.1} parent=1 // pred_region
      %103 = dma.done [#allocation9], 1024
    $region49: #{tpu_custom_call.1} parent=1 // pred_fallthru
      _
    // Predicated region
    $region50: #{tpu_custom_call.1} parent=1 // pred_check
      _
    $region51: #{tpu_custom_call.1} parent=1 // pred_check_branch
      %105 = sbr.rel (0) target = $region53
    $region52: #{tpu_custom_call.1} parent=1 // pred_region
      %107 = dma.done [#allocation9], 1024
    $region53: #{tpu_custom_call.1} parent=1 // pred_fallthru
      _
    %v109 = vld [vmem:[#allocation5] sm:$0xf]
    %v110 = vld [vmem:[#allocation5 + $0x4] sm:$0xf]
    %v111 = vld [vmem:[#allocation2] sm:$0xf]
    %v112 = vld [vmem:[#allocation2 + $0x4] sm:$0xf]
    %v113 = vld [vmem:[#allocation7] sm:$0xf]
    %v114 = vld [vmem:[#allocation7 + $0x4] sm:$0xf]
    %v115 = vld [vmem:[#allocation7 + $0x8] sm:$0xf]
    %v116 = vld [vmem:[#allocation7 + $0xc] sm:$0xf]
    %v117 = vld [vmem:[#allocation7 + $0x10] sm:$0xf]
    %v118 = vld [vmem:[#allocation7 + $0x14] sm:$0xf]
    %v119 = vld [vmem:[#allocation7 + $0x18] sm:$0xf]
    %v120 = vld [vmem:[#allocation7 + $0x1c] sm:$0xf]
    %v121 = vld [vmem:[#allocation7 + $0x20] sm:$0xf]
    %v122 = vld [vmem:[#allocation7 + $0x24] sm:$0xf]
    %v123 = vld [vmem:[#allocation7 + $0x28] sm:$0xf]
    %v124 = vld [vmem:[#allocation7 + $0x2c] sm:$0xf]
    %v125 = vld [vmem:[#allocation7 + $0x30] sm:$0xf]
    %v126 = vld [vmem:[#allocation7 + $0x34] sm:$0xf]
    %v127 = vld [vmem:[#allocation7 + $0x38] sm:$0xf]
    %v128 = vld [vmem:[#allocation7 + $0x3c] sm:$0xf]
    %v129 = vld [vmem:[%s3] sm:$0x1]
    %v131 = vperm.slane %v129, 0
    %v135 = vunpack.c.l.b16 %v111
    %v136 = vunpack.c.l.b16 %v112
    %v137 = vpack.c.b16 %v136, %v135
    %v155 = vunpack.c.l.b16 %v113
    %v156 = vunpack.c.l.b16 %v114
    %v157 = vunpack.c.l.b16 %v115
    %v158 = vunpack.c.l.b16 %v116
    %v159 = vunpack.c.l.b16 %v117
    %v160 = vunpack.c.l.b16 %v118
    %v161 = vunpack.c.l.b16 %v119
    %v162 = vunpack.c.l.b16 %v120
    %v163 = vunpack.c.l.b16 %v121
    %v164 = vunpack.c.l.b16 %v122
    %v165 = vunpack.c.l.b16 %v123
    %v166 = vunpack.c.l.b16 %v124
    %v167 = vunpack.c.l.b16 %v125
    %v168 = vunpack.c.l.b16 %v126
    %v169 = vunpack.c.l.b16 %v127
    %v170 = vunpack.c.l.b16 %v128
    %v171 = vpack.c.b16 %v156, %v155
    %v172 = vpack.c.b16 %v158, %v157
    %v173 = vpack.c.b16 %v160, %v159
    %v174 = vpack.c.b16 %v162, %v161
    %v175 = vpack.c.b16 %v164, %v163
    %v176 = vpack.c.b16 %v166, %v165
    %v177 = vpack.c.b16 %v168, %v167
    %v178 = vpack.c.b16 %v170, %v169
    %187 = vmatpush.bf16.msra.mxu0 %v178
    %188 = vmatpush.bf16.msra.mxu0 %v177
    %189 = vmatpush.bf16.msra.mxu0 %v176
    %190 = vmatpush.bf16.msra.mxu0 %v175
    %191 = vmatpush.bf16.msra.mxu0 %v174
    %192 = vmatpush.bf16.msra.mxu0 %v173
    %193 = vmatpush.bf16.msra.mxu0 %v172
    %194 = vmatpush.bf16.msra.mxu0 %v171
    %195 = vmatmul.bf16.gmra.mxu0 %v137
    %v196 = vpop.f32.mrf.mxu0
    %v197 = vadd.f32 %v131, %v196
    %v198 = vpop.f32.mrf.mxu0
    %v199 = vadd.f32 %v131, %v198
    %200 = vdwg.mxu0
    %v201 = vpack.c.bf16 %v199, %v197
    %v204 = vunpack.c.l.b16 %v109
    %v205 = vunpack.c.l.b16 %v110
    %v206 = vpack.c.b16 %v205, %v204
    %vm207 = vcmask 130048
    %v209 = vsel %vm207, %v206, 0
    %211 = vmatpush.bf16.msra.mxu0 0
    %212 = vmatpush.bf16.msra.mxu0 0
    %213 = vmatpush.bf16.msra.mxu0 0
    %214 = vmatpush.bf16.msra.mxu0 0
    %215 = vmatpush.bf16.msra.mxu0 0
    %216 = vmatpush.bf16.msra.mxu0 0
    %217 = vmatpush.bf16.msra.mxu0 0
    %218 = vmatpush.bf16.msra.mxu0 %v201
    %219 = vmatmul.bf16.gmra.mxu0 %v209
    %v220 = vpop.f32.mrf.mxu0
    %v221 = vadd.f32 0.0, %v220
    %v222 = vpop.f32.mrf.mxu0
    %v223 = vadd.f32 0.0, %v222
    %224 = vdwg.mxu0
    %v225 = vmax.f32 %v221, 0.0
    %v226 = vmax.f32 %v223, 0.0
    %v227 = vpack.c.bf16 %v226, %v225
    %v228 = vld [vmem:[#allocation8] sm:$0xf]
    %v229 = vld [vmem:[#allocation8 + $0x4] sm:$0xf]
    %v230 = vld [vmem:[#allocation8 + $0x8] sm:$0xf]
    %v231 = vld [vmem:[#allocation8 + $0xc] sm:$0xf]
    %v232 = vld [vmem:[#allocation8 + $0x10] sm:$0xf]
    %v233 = vld [vmem:[#allocation8 + $0x14] sm:$0xf]
    %v234 = vld [vmem:[#allocation8 + $0x18] sm:$0xf]
    %v235 = vld [vmem:[#allocation8 + $0x1c] sm:$0xf]
    %v236 = vld [vmem:[#allocation8 + $0x20] sm:$0xf]
    %v237 = vld [vmem:[#allocation8 + $0x24] sm:$0xf]
    %v238 = vld [vmem:[#allocation8 + $0x28] sm:$0xf]
    %v239 = vld [vmem:[#allocation8 + $0x2c] sm:$0xf]
    %v240 = vld [vmem:[#allocation8 + $0x30] sm:$0xf]
    %v241 = vld [vmem:[#allocation8 + $0x34] sm:$0xf]
    %v242 = vld [vmem:[#allocation8 + $0x38] sm:$0xf]
    %v243 = vld [vmem:[#allocation8 + $0x3c] sm:$0xf]
    %v244 = vld [vmem:[%s5] sm:$0x1]
    %v246 = vperm.slane %v244, 0
    %v264 = vunpack.c.l.b16 %v228
    %v265 = vunpack.c.l.b16 %v229
    %v266 = vunpack.c.l.b16 %v230
    %v267 = vunpack.c.l.b16 %v231
    %v268 = vunpack.c.l.b16 %v232
    %v269 = vunpack.c.l.b16 %v233
    %v270 = vunpack.c.l.b16 %v234
    %v271 = vunpack.c.l.b16 %v235
    %v272 = vunpack.c.l.b16 %v236
    %v273 = vunpack.c.l.b16 %v237
    %v274 = vunpack.c.l.b16 %v238
    %v275 = vunpack.c.l.b16 %v239
    %v276 = vunpack.c.l.b16 %v240
    %v277 = vunpack.c.l.b16 %v241
    %v278 = vunpack.c.l.b16 %v242
    %v279 = vunpack.c.l.b16 %v243
    %v280 = vpack.c.b16 %v265, %v264
    %v281 = vpack.c.b16 %v267, %v266
    %v282 = vpack.c.b16 %v269, %v268
    %v283 = vpack.c.b16 %v271, %v270
    %v284 = vpack.c.b16 %v273, %v272
    %v285 = vpack.c.b16 %v275, %v274
    %v286 = vpack.c.b16 %v277, %v276
    %v287 = vpack.c.b16 %v279, %v278
    %296 = vmatpush.bf16.msra.mxu0 %v287
    %297 = vmatpush.bf16.msra.mxu0 %v286
    %298 = vmatpush.bf16.msra.mxu0 %v285
    %299 = vmatpush.bf16.msra.mxu0 %v284
    %300 = vmatpush.bf16.msra.mxu0 %v283
    %301 = vmatpush.bf16.msra.mxu0 %v282
    %302 = vmatpush.bf16.msra.mxu0 %v281
    %303 = vmatpush.bf16.msra.mxu0 %v280
    %304 = vmatmul.bf16.gmra.mxu0 %v227
    %v305 = vpop.f32.mrf.mxu0
    %v306 = vadd.f32 %v246, %v305
    %v307 = vpop.f32.mrf.mxu0
    %v308 = vadd.f32 %v246, %v307
    %309 = vdwg.mxu0
    %v310 = vpack.c.bf16 %v308, %v306
    %311 = vmatpush.bf16.msra.mxu0 0
    %312 = vmatpush.bf16.msra.mxu0 0
    %313 = vmatpush.bf16.msra.mxu0 0
    %314 = vmatpush.bf16.msra.mxu0 0
    %315 = vmatpush.bf16.msra.mxu0 0
    %316 = vmatpush.bf16.msra.mxu0 0
    %317 = vmatpush.bf16.msra.mxu0 0
    %318 = vmatpush.bf16.msra.mxu0 %v310
    %319 = vmatmul.bf16.gmra.mxu0 %v209
    %v320 = vpop.f32.mrf.mxu0
    %v321 = vadd.f32 0.0, %v320
    %v322 = vpop.f32.mrf.mxu0
    %v323 = vadd.f32 0.0, %v322
    %324 = vdwg.mxu0
    %v325 = vmax.f32 %v321, 0.0
    %v326 = vmax.f32 %v323, 0.0
    %v327 = vpack.c.bf16 %v326, %v325
    %v328 = vld [vmem:[#allocation10] sm:$0xf]
    %v329 = vld [vmem:[#allocation10 + $0x4] sm:$0xf]
    %v330 = vld [vmem:[#allocation10 + $0x8] sm:$0xf]
    %v331 = vld [vmem:[#allocation10 + $0xc] sm:$0xf]
    %v332 = vld [vmem:[#allocation10 + $0x10] sm:$0xf]
    %v333 = vld [vmem:[#allocation10 + $0x14] sm:$0xf]
    %v334 = vld [vmem:[#allocation10 + $0x18] sm:$0xf]
    %v335 = vld [vmem:[#allocation10 + $0x1c] sm:$0xf]
    %v336 = vld [vmem:[#allocation10 + $0x20] sm:$0xf]
    %v337 = vld [vmem:[#allocation10 + $0x24] sm:$0xf]
    %v338 = vld [vmem:[#allocation10 + $0x28] sm:$0xf]
    %v339 = vld [vmem:[#allocation10 + $0x2c] sm:$0xf]
    %v340 = vld [vmem:[#allocation10 + $0x30] sm:$0xf]
    %v341 = vld [vmem:[#allocation10 + $0x34] sm:$0xf]
    %v342 = vld [vmem:[#allocation10 + $0x38] sm:$0xf]
    %v343 = vld [vmem:[#allocation10 + $0x3c] sm:$0xf]
    %v344 = vld [vmem:[%s7] sm:$0x1]
    %v346 = vperm.slane %v344, 0
    %v364 = vunpack.c.l.b16 %v328
    %v365 = vunpack.c.l.b16 %v329
    %v366 = vunpack.c.l.b16 %v330
    %v367 = vunpack.c.l.b16 %v331
    %v368 = vunpack.c.l.b16 %v332
    %v369 = vunpack.c.l.b16 %v333
    %v370 = vunpack.c.l.b16 %v334
    %v371 = vunpack.c.l.b16 %v335
    %v372 = vunpack.c.l.b16 %v336
    %v373 = vunpack.c.l.b16 %v337
    %v374 = vunpack.c.l.b16 %v338
    %v375 = vunpack.c.l.b16 %v339
    %v376 = vunpack.c.l.b16 %v340
    %v377 = vunpack.c.l.b16 %v341
    %v378 = vunpack.c.l.b16 %v342
    %v379 = vunpack.c.l.b16 %v343
    %v380 = vpack.c.b16 %v365, %v364
    %v381 = vpack.c.b16 %v367, %v366
    %v382 = vpack.c.b16 %v369, %v368
    %v383 = vpack.c.b16 %v371, %v370
    %v384 = vpack.c.b16 %v373, %v372
    %v385 = vpack.c.b16 %v375, %v374
    %v386 = vpack.c.b16 %v377, %v376
    %v387 = vpack.c.b16 %v379, %v378
    %396 = vmatpush.bf16.msra.mxu0 %v387
    %397 = vmatpush.bf16.msra.mxu0 %v386
    %398 = vmatpush.bf16.msra.mxu0 %v385
    %399 = vmatpush.bf16.msra.mxu0 %v384
    %400 = vmatpush.bf16.msra.mxu0 %v383
    %401 = vmatpush.bf16.msra.mxu0 %v382
    %402 = vmatpush.bf16.msra.mxu0 %v381
    %403 = vmatpush.bf16.msra.mxu0 %v380
    %404 = vmatmul.bf16.gmra.mxu0 %v327
    %v405 = vpop.f32.mrf.mxu0
    %v406 = vadd.f32 %v346, %v405
    %v407 = vpop.f32.mrf.mxu0
    %v408 = vadd.f32 %v346, %v407
    %409 = vdwg.mxu0
    %v410 = vpack.c.bf16 %v408, %v406
    %411 = vmatpush.bf16.msra.mxu0 0
    %412 = vmatpush.bf16.msra.mxu0 0
    %413 = vmatpush.bf16.msra.mxu0 0
    %414 = vmatpush.bf16.msra.mxu0 0
    %415 = vmatpush.bf16.msra.mxu0 0
    %416 = vmatpush.bf16.msra.mxu0 0
    %417 = vmatpush.bf16.msra.mxu0 0
    %418 = vmatpush.bf16.msra.mxu0 %v410
    %419 = vmatmul.bf16.gmra.mxu0 %v209
    %v420 = vpop.f32.mrf.mxu0
    %v421 = vadd.f32 0.0, %v420
    %v422 = vpop.f32.mrf.mxu0
    %v423 = vadd.f32 0.0, %v422
    %424 = vdwg.mxu0
    %v425 = vlaneseq
    %v426 = vand.u32 %v425, 127
    %vm427 = vcmp.lt.s32.totalorder %v426, 8
    %v428 = vsel %vm427, %v421, -inf
    %v429 = vsel %vm427, %v423, -inf
    %430 = vmax.xlane.f32.xlu0 %v428
    %v431 = vpop.xlane.xlu0 %430
    %432 = vmax.xlane.f32.xlu0 %v429
    %v433 = vpop.xlane.xlu0 %432
    %v434 = vsub.f32 %v428, %v431
    %v435 = vsub.f32 %v429, %v433
    %v436 = vmul.f32 %v434, 1.442695
    %v437 = vpow.pop %v436
    %v438 = vmul.f32 %v435, 1.442695
    %v439 = vpow.pop %v438
    %440 = vadd.xlane.f32.xlu0 %v437
    %v441 = vpop.xlane.xlu0 %440
    %442 = vadd.xlane.f32.xlu0 %v439
    %v443 = vpop.xlane.xlu0 %442
    %v444 = vlog2.pop %v441
    %v445 = vmul.f32 %v444, 0.6931472
    %v446 = vlog2.pop %v443
    %v447 = vmul.f32 %v446, 0.6931472
    %v448 = vsub.f32 %v434, %v445
    %v449 = vsub.f32 %v435, %v447
    %450 = vst [vmem:[#allocation11] sm:$0xff] %v448
    %451 = vst [vmem:[#allocation11 + $0x8] sm:$0xff] %v449
    // Predicated region
    $region54: #{tpu_custom_call.1} parent=1 // pred_check
      _
    $region55: #{tpu_custom_call.1} parent=1 // pred_check_branch
      %453 = sbr.rel (0) target = $region57
    $region56: #{tpu_custom_call.1} parent=1 // pred_region
      %455 = vsyncadd [#allocation4], 0
      %s456 = sshll.u32 [#allocation11], 4
      %s457 = int_to_ptr.vmem [resolvable:$true] %s456
      %s458 = sshll.u32 %s8, 4
      %s459 = int_to_ptr.hbm [resolvable:$true] %s458
      %464 = dma.vmem_to_hbm [thread:$0]  %s457, 256, %s459, [#allocation4], 128, 128, 8
    $region57: #{tpu_custom_call.1} parent=1 // pred_fallthru
      _
    // Predicated region
    $region58: #{tpu_custom_call.1} parent=1 // pred_check
      _
    $region59: #{tpu_custom_call.1} parent=1 // pred_check_branch
      %466 = sbr.rel (0) target = $region61
    $region60: #{tpu_custom_call.1} parent=1 // pred_region
      %468 = dma.done [#allocation4], 256
    $region61: #{tpu_custom_call.1} parent=1 // pred_fallthru
      _
    %469 = vsyncpa [#allocation3], 1
    %470 = vsyncpa [#allocation6], 1
    %471 = vsyncpa [#allocation9], 1
    %472 = vsyncpa [#allocation4], 1

</llo_original>
